<compile_context>
chip_gen: v5e
topology: v5e:2x2
jax: 0.10.0
libtpu: 0.0.40
codegen_flags: <defaults>
</compile_context>

<pallas_src>
import functools

import jax
import jax.numpy as jnp
from jax.experimental import pallas as pl
from jax.experimental.pallas import tpu as pltpu


def _critic_kernel(s_ref, a_ref, w1s_ref, w1a_ref, w2_ref, small_ref, b3_ref, o_ref):
    # Layer 1 (concat fused): x @ W1 == state @ W1[:ni] + action @ W1[ni:]
    h = jnp.dot(s_ref[...], w1s_ref[...], preferred_element_type=jnp.float32)
    h = h + jnp.dot(a_ref[...], w1a_ref[...], preferred_element_type=jnp.float32)
    h1 = jnp.maximum(h + small_ref[0:1, :], 0.0)                   # + b1, ReLU
    # Layer 2
    h2 = jnp.dot(h1, w2_ref[...], preferred_element_type=jnp.float32)
    h2 = jnp.maximum(h2 + small_ref[1:2, :], 0.0)                  # + b2, ReLU
    # Layer 3 (out_features == 1): VPU mul + lane reduce, MXU stays idle.
    q = jnp.sum(h2 * small_ref[2:3, :], axis=-1, keepdims=True)    # (TB, 1)
    q = q + b3_ref[0]                                              # scalar bias (SMEM)
    o_ref[...] = q.astype(o_ref.dtype)


def prepare_params(params, num_inputs):
    """One-time layout plumbing: split W1, pack the small per-layer params."""
    w1, b1, w2, b2, w3, b3 = params
    hidden = w1.shape[1]
    w1s = w1[:num_inputs]                                          # (ni, H)
    w1a = w1[num_inputs:]                                          # (na, H)
    smalls = jnp.concatenate(
        [jnp.reshape(b1, (1, hidden)),
         jnp.reshape(b2, (1, hidden)),
         jnp.reshape(w3, (1, hidden))], axis=0).astype(jnp.float32)  # (3, H)
    b3s = jnp.reshape(b3, (1,)).astype(jnp.float32)                  # (1,) in SMEM
    return w1s, w1a, w2.astype(jnp.float32), smalls, b3s


def critic_forward(state, action, cparams, *, block_b=512):
    """state: (B, num_inputs), action: (B, num_actions) -> q: (B,) float32."""
    w1s, w1a, w2, smalls, b3s = cparams
    B, ni = state.shape
    na = action.shape[1]
    H = w2.shape[0]

    # Batch tiling: single block when B is small, otherwise block_b-row tiles
    # (pad up to a tile multiple; padded rows are sliced off afterwards).
    if B <= block_b:
        tb, bp = B, B
    else:
        tb = block_b
        bp = ((B + tb - 1) // tb) * tb
    if bp != B:
        pad = bp - B
        state = jnp.pad(state, ((0, pad), (0, 0)))
        action = jnp.pad(action, ((0, pad), (0, 0)))

    resident = lambda shape: pl.BlockSpec(shape, lambda i: (0, 0))  # fetched once

    out = pl.pallas_call(
        _critic_kernel,
        out_shape=jax.ShapeDtypeStruct((bp, 1), jnp.float32),
        grid=(bp // tb,),
        in_specs=[
            pl.BlockSpec((tb, ni), lambda i: (i, 0)),               # state tile
            pl.BlockSpec((tb, na), lambda i: (i, 0)),               # action tile
            resident((ni, H)),                                      # W1[:ni]
            resident((na, H)),                                      # W1[ni:]
            resident((H, H)),                                       # W2
            resident((3, H)),                                       # [b1; b2; w3^T]
            pl.BlockSpec(memory_space=pltpu.MemorySpace.SMEM),      # b3 scalar
        ],
        out_specs=pl.BlockSpec((tb, 1), lambda i: (i, 0)),
        compiler_params=pltpu.CompilerParams(
            dimension_semantics=("parallel",)),
    )(state, action, w1s, w1a, w2, smalls, b3s)
    return out[:B, 0]


def init_params(key, num_inputs, num_actions, hidden_dim):
    """Deterministic init matching torch.nn.Linear default U(-1/sqrt(fan_in), +)."""
    dims = [(num_inputs + num_actions, hidden_dim),
            (hidden_dim, hidden_dim),
            (hidden_dim, 1)]
    params = []
    for fan_in, fan_out in dims:
        key, kw, kb = jax.random.split(key, 3)
        bound = 1.0 / (fan_in ** 0.5)
        w = jax.random.uniform(kw, (fan_in, fan_out), jnp.float32, -bound, bound)
        b = jax.random.uniform(kb, (1, fan_out), jnp.float32, -bound, bound)
        params += [w, b]
    return tuple(params)


if __name__ == "__main__":
    num_inputs, num_actions, hidden_dim = 16, 8, 32

    key = jax.random.PRNGKey(0)
    key, ks, ka, kp = jax.random.split(key, 4)
    params = init_params(kp, num_inputs, num_actions, hidden_dim)
    cparams = prepare_params(params, num_inputs)

    def reference(state, action):
        w1, b1, w2, b2, w3, b3 = params
        x = jnp.concatenate([state, action], axis=1)
        h1 = jnp.maximum(x @ w1 + b1, 0.0)
        h2 = jnp.maximum(h1 @ w2 + b2, 0.0)
        return jnp.squeeze(h2 @ w3 + b3, -1)

    # Case 1: small batch, single block (grid of 1).
    batch = 8
    state = jax.random.normal(ks, (batch, num_inputs), jnp.float32)
    action = jax.random.normal(ka, (batch, num_actions), jnp.float32)
    fwd = jax.jit(functools.partial(critic_forward, block_b=512))
    q = fwd(state, action, cparams)
    jax.block_until_ready(q)
    assert q.shape == (batch,), q.shape
    assert jnp.allclose(q, reference(state, action), atol=2e-5, rtol=2e-5)

    # Case 2: larger batch exercising tiling + padding + resident weights
    # + the parallel batch grid axis.
    batch2 = 300
    key, ks2, ka2 = jax.random.split(key, 3)
    state2 = jax.random.normal(ks2, (batch2, num_inputs), jnp.float32)
    action2 = jax.random.normal(ka2, (batch2, num_actions), jnp.float32)
    fwd_tiled = jax.jit(functools.partial(critic_forward, block_b=128))
    q2 = fwd_tiled(state2, action2, cparams)
    jax.block_until_ready(q2)
    assert q2.shape == (batch2,), q2.shape
    assert jnp.allclose(q2, reference(state2, action2), atol=2e-5, rtol=2e-5)

    print("KERNEL_OK")
</pallas_src>

<mosaic_0001>
module attributes {stable_mosaic.version = 11 : i64} {
  func.func @_critic_kernel(%arg0: i32, %arg1: memref<8x16xf32, #tpu.memory_space<vmem>>, %arg2: memref<8x8xf32, #tpu.memory_space<vmem>>, %arg3: memref<16x32xf32, #tpu.memory_space<vmem>>, %arg4: memref<8x32xf32, #tpu.memory_space<vmem>>, %arg5: memref<32x32xf32, #tpu.memory_space<vmem>>, %arg6: memref<3x32xf32, #tpu.memory_space<vmem>>, %arg7: memref<1xf32, #tpu.memory_space<smem>>, %arg8: memref<8x1xf32, #tpu.memory_space<vmem>>) attributes {dimension_semantics = [#tpu.dimension_semantics<parallel>], iteration_bounds = array<i64: 1>, scalar_prefetch = 0 : i64, scratch_operands = 0 : i64, tpu.core_type = #tpu.core_type<tc>, window_params = [{transform_indices = @transform_0, window_bounds = array<i64: 8, 16>}, {transform_indices = @transform_1, window_bounds = array<i64: 8, 8>}, {pipeline_mode = #tpu.pipeline_mode<synchronous>, transform_indices = @transform_2, window_bounds = array<i64: 16, 32>}, {pipeline_mode = #tpu.pipeline_mode<synchronous>, transform_indices = @transform_3, window_bounds = array<i64: 8, 32>}, {pipeline_mode = #tpu.pipeline_mode<synchronous>, transform_indices = @transform_4, window_bounds = array<i64: 32, 32>}, {pipeline_mode = #tpu.pipeline_mode<synchronous>, transform_indices = @transform_5, window_bounds = array<i64: 3, 32>}, {transform_indices = @transform_6, window_bounds = array<i64: 1>}, {transform_indices = @transform_7, window_bounds = array<i64: 8, 1>}]} {
    %c0 = arith.constant 0 : index
    %c0_0 = arith.constant 0 : index
    %0 = vector.load %arg1[%c0, %c0_0] : memref<8x16xf32, #tpu.memory_space<vmem>>, vector<8x16xf32>
    %c0_1 = arith.constant 0 : index
    %c0_2 = arith.constant 0 : index
    %1 = vector.load %arg3[%c0_1, %c0_2] : memref<16x32xf32, #tpu.memory_space<vmem>>, vector<16x32xf32>
    %cst = arith.constant dense<0.000000e+00> : vector<8x32xf32>
    %2 = tpu.matmul %0, %1, %cst {dimension_numbers = #tpu.dot_dimension_numbers<[1], [0], [0], [1], [0, 0, 1, 1], [], []>} : vector<8x16xf32>, vector<16x32xf32>, vector<8x32xf32> -> vector<8x32xf32>
    %c0_3 = arith.constant 0 : index
    %c0_4 = arith.constant 0 : index
    %3 = vector.load %arg2[%c0_3, %c0_4] : memref<8x8xf32, #tpu.memory_space<vmem>>, vector<8x8xf32>
    %c0_5 = arith.constant 0 : index
    %c0_6 = arith.constant 0 : index
    %4 = vector.load %arg4[%c0_5, %c0_6] : memref<8x32xf32, #tpu.memory_space<vmem>>, vector<8x32xf32>
    %cst_7 = arith.constant dense<0.000000e+00> : vector<8x32xf32>
    %5 = tpu.matmul %3, %4, %cst_7 {dimension_numbers = #tpu.dot_dimension_numbers<[1], [0], [0], [1], [0, 0, 1, 1], [], []>} : vector<8x8xf32>, vector<8x32xf32>, vector<8x32xf32> -> vector<8x32xf32>
    %6 = arith.addf %2, %5 : vector<8x32xf32>
    %c0_8 = arith.constant 0 : index
    %c0_9 = arith.constant 0 : index
    %7 = vector.load %arg6[%c0_8, %c0_9] : memref<3x32xf32, #tpu.memory_space<vmem>>, vector<1x32xf32>
    %8 = vector.broadcast %7 : vector<1x32xf32> to vector<8x32xf32>
    %9 = arith.addf %6, %8 : vector<8x32xf32>
    %cst_10 = arith.constant 0.000000e+00 : f32
    %10 = vector.broadcast %cst_10 : f32 to vector<8x32xf32>
    %11 = arith.maximumf %9, %10 : vector<8x32xf32>
    %c0_11 = arith.constant 0 : index
    %c0_12 = arith.constant 0 : index
    %12 = vector.load %arg5[%c0_11, %c0_12] : memref<32x32xf32, #tpu.memory_space<vmem>>, vector<32x32xf32>
    %cst_13 = arith.constant dense<0.000000e+00> : vector<8x32xf32>
    %13 = tpu.matmul %11, %12, %cst_13 {dimension_numbers = #tpu.dot_dimension_numbers<[1], [0], [0], [1], [0, 0, 1, 1], [], []>} : vector<8x32xf32>, vector<32x32xf32>, vector<8x32xf32> -> vector<8x32xf32>
    %c1 = arith.constant 1 : index
    %c0_14 = arith.constant 0 : index
    %14 = vector.load %arg6[%c1, %c0_14] : memref<3x32xf32, #tpu.memory_space<vmem>>, vector<1x32xf32>
    %15 = vector.broadcast %14 : vector<1x32xf32> to vector<8x32xf32>
    %16 = arith.addf %13, %15 : vector<8x32xf32>
    %cst_15 = arith.constant 0.000000e+00 : f32
    %17 = vector.broadcast %cst_15 : f32 to vector<8x32xf32>
    %18 = arith.maximumf %16, %17 : vector<8x32xf32>
    %c2 = arith.constant 2 : index
    %c0_16 = arith.constant 0 : index
    %19 = vector.load %arg6[%c2, %c0_16] : memref<3x32xf32, #tpu.memory_space<vmem>>, vector<1x32xf32>
    %20 = vector.broadcast %19 : vector<1x32xf32> to vector<8x32xf32>
    %21 = arith.mulf %18, %20 : vector<8x32xf32>
    %cst_17 = arith.constant dense<0.000000e+00> : vector<8xf32>
    %22 = vector.multi_reduction <add>, %21, %cst_17 [1] : vector<8x32xf32> to vector<8xf32>
    %23 = vector.shape_cast %22 : vector<8xf32> to vector<8x1xf32>
    %c0_18 = arith.constant 0 : index
    %24 = memref.load %arg7[%c0_18] : memref<1xf32, #tpu.memory_space<smem>>
    %25 = vector.broadcast %24 : f32 to vector<8x1xf32>
    %26 = arith.addf %23, %25 : vector<8x1xf32>
    %c0_19 = arith.constant 0 : index
    %c0_20 = arith.constant 0 : index
    %27 = vector.load %arg8[%c0_19, %c0_20] : memref<8x1xf32, #tpu.memory_space<vmem>>, vector<8x1xf32>
    tpu.vector_store %arg8[%c0_19, %c0_20], %26 {strides = array<i32>} : memref<8x1xf32, #tpu.memory_space<vmem>>, vector<8x1xf32>,
    return
  }
  func.func @transform_0(%arg0: i32) -> (i32, i32) {
    %c0_i32 = arith.constant 0 : i32
    %c0_i32_0 = arith.constant 0 : i32
    return %arg0, %c0_i32 : i32, i32
  }
  func.func @transform_1(%arg0: i32) -> (i32, i32) {
    %c0_i32 = arith.constant 0 : i32
    %c0_i32_0 = arith.constant 0 : i32
    return %arg0, %c0_i32 : i32, i32
  }
  func.func @transform_2(%arg0: i32) -> (i32, i32) {
    %c0_i32 = arith.constant 0 : i32
    %c0_i32_0 = arith.constant 0 : i32
    %c0_i32_1 = arith.constant 0 : i32
    return %c0_i32, %c0_i32_0 : i32, i32
  }
  func.func @transform_3(%arg0: i32) -> (i32, i32) {
    %c0_i32 = arith.constant 0 : i32
    %c0_i32_0 = arith.constant 0 : i32
    %c0_i32_1 = arith.constant 0 : i32
    return %c0_i32, %c0_i32_0 : i32, i32
  }
  func.func @transform_4(%arg0: i32) -> (i32, i32) {
    %c0_i32 = arith.constant 0 : i32
    %c0_i32_0 = arith.constant 0 : i32
    %c0_i32_1 = arith.constant 0 : i32
    return %c0_i32, %c0_i32_0 : i32, i32
  }
  func.func @transform_5(%arg0: i32) -> (i32, i32) {
    %c0_i32 = arith.constant 0 : i32
    %c0_i32_0 = arith.constant 0 : i32
    %c0_i32_1 = arith.constant 0 : i32
    return %c0_i32, %c0_i32_0 : i32, i32
  }
  func.func @transform_6(%arg0: i32) -> i32 {
    %c0_i32 = arith.constant 0 : i32
    %c0_i32_0 = arith.constant 0 : i32
    return %c0_i32 : i32
  }
  func.func @transform_7(%arg0: i32) -> (i32, i32) {
    %c0_i32 = arith.constant 0 : i32
    %c0_i32_0 = arith.constant 0 : i32
    return %arg0, %c0_i32 : i32, i32
  }
}

</mosaic_0001>

<llo_original>
// kernel: critic_forward.1
$region0: #{critic_forward.1}
  #allocation0 [shape = 'u32[]', space=smem, size = 0x4, offset = 0x4, fixed_abs, tag = 'smem constant byte address 0x4 - core index']
  #allocation1 [shape = 'u32[72,128]{1,0:T(1,128)}', space=vmem, size = 0x9000, scoped, tag = 'internal scratch']
  #allocation2 [shape = 'f32[1]{0:T(128)S(6)}', space=smem, size = 0x200, scoped, tag = 'scoped memory for critic_forward.1']
  %s0 = inlined_call_operand.hbm [shape: f32[8,16], index: 0, kind: input, shape index: {}]
  %s1 = inlined_call_operand.hbm [shape: f32[8,8], index: 1, kind: input, shape index: {}]
  %s2 = inlined_call_operand.hbm [shape: f32[16,32], index: 2, kind: input, shape index: {}]
  %s3 = inlined_call_operand.hbm [shape: f32[8,32], index: 3, kind: input, shape index: {}]
  %s4 = inlined_call_operand.hbm [shape: f32[32,32], index: 4, kind: input, shape index: {}]
  %s5 = inlined_call_operand.vmem [shape: f32[3,32], index: 5, kind: input, shape index: {}]
  %s6 = inlined_call_operand.<no memory space> [shape: f32[1], index: 6, kind: input, shape index: {}]
  %s7 = inlined_call_operand.vmem [shape: f32[8,1], index: 7, kind: output, shape index: {}]
  %s8 = sld [smem:[#allocation0]]
  $region58: #{critic_forward.1} parent=0
    _
  %s10 = ssub.s32 1, %s8
  %s11 = scalar_select 0, %s10, %s8
  %12 = sst [smem:[#allocation2]] %s6
  $region1: #{critic_forward.1} parent=0
    #allocation3 [shape = 'u8[4096]{0}', space=vmem, size = 0x1000, scoped, tag = 'input window, operand 0, single buffered']
    #allocation4 [shape = 's32[1]{0}', space=sflag, size = 0x4, scoped, tag = 'scoped memory for critic_forward.1']
    #allocation5 [shape = 'u8[4096]{0}', space=vmem, size = 0x1000, scoped, tag = 'input window, operand 1, single buffered']
    #allocation6 [shape = 's32[1]{0}', space=sflag, size = 0x4, scoped, tag = 'scoped memory for critic_forward.1']
    #allocation7 [shape = 'u8[8192]{0}', space=vmem, size = 0x2000, scoped, tag = 'input window, operand 2, single buffered']
    #allocation8 [shape = 'u8[4096]{0}', space=vmem, size = 0x1000, scoped, tag = 'input window, operand 3, single buffered']
    #allocation9 [shape = 's32[1]{0}', space=sflag, size = 0x4, scoped, tag = 'scoped memory for critic_forward.1']
    #allocation10 [shape = 'u8[16384]{0}', space=vmem, size = 0x4000, scoped, tag = 'input window, operand 4, single buffered']
    %13 = vsyncpa [#allocation4], 0
    %14 = vsyncpa [#allocation6], 0
    %15 = vsyncpa [#allocation9], 0
    // Predicated region
    $region2: #{critic_forward.1} parent=1 // pred_check
      _
    $region3: #{critic_forward.1} parent=1 // pred_check_branch
      %17 = sbr.rel (0) target = $region5
    $region4: #{critic_forward.1} parent=1 // pred_region
      %19 = vsyncadd [#allocation4], 0
      %s21 = sshll.u32 %s0, 4
      %s22 = int_to_ptr.hbm [resolvable:$true] %s21
      %s23 = sshll.u32 [#allocation3], 4
      %s24 = int_to_ptr.vmem [resolvable:$true] %s23
      %26 = dma.hbm_to_vmem [thread:$0]  %s22, 128, %s24, [#allocation4]
    $region5: #{critic_forward.1} parent=1 // pred_fallthru
      _
    // Predicated region
    $region6: #{critic_forward.1} parent=1 // pred_check
      _
    $region7: #{critic_forward.1} parent=1 // pred_check_branch
      %28 = sbr.rel (0) target = $region9
    $region8: #{critic_forward.1} parent=1 // pred_region
      %30 = vsyncadd [#allocation6], 0
      %s32 = sshll.u32 %s1, 4
      %s33 = int_to_ptr.hbm [resolvable:$true] %s32
      %s34 = sshll.u32 [#allocation5], 4
      %s35 = int_to_ptr.vmem [resolvable:$true] %s34
      %37 = dma.hbm_to_vmem [thread:$0]  %s33, 128, %s35, [#allocation6]
    $region9: #{critic_forward.1} parent=1 // pred_fallthru
      _
    // Predicated region
    $region10: #{critic_forward.1} parent=1 // pred_check
      _
    $region11: #{critic_forward.1} parent=1 // pred_check_branch
      %39 = sbr.rel (0) target = $region13
    $region12: #{critic_forward.1} parent=1 // pred_region
      %41 = vsyncadd [#allocation6], 0
      %s42 = sshll.u32 %s2, 4
      %s43 = int_to_ptr.hbm [resolvable:$true] %s42
      %s44 = sshll.u32 [#allocation7], 4
      %s45 = int_to_ptr.vmem [resolvable:$true] %s44
      %50 = dma.hbm_to_vmem [thread:$0]  %s43, 256, %s45, [#allocation6], 128, 128, 8
    $region13: #{critic_forward.1} parent=1 // pred_fallthru
      _
    // Predicated region
    $region14: #{critic_forward.1} parent=1 // pred_check
      _
    $region15: #{critic_forward.1} parent=1 // pred_check_branch
      %52 = sbr.rel (0) target = $region17
    $region16: #{critic_forward.1} parent=1 // pred_region
      %54 = vsyncadd [#allocation9], 0
      %s56 = sshll.u32 %s3, 4
      %s57 = int_to_ptr.hbm [resolvable:$true] %s56
      %s58 = sshll.u32 [#allocation8], 4
      %s59 = int_to_ptr.vmem [resolvable:$true] %s58
      %61 = dma.hbm_to_vmem [thread:$0]  %s57, 128, %s59, [#allocation9]
    $region17: #{critic_forward.1} parent=1 // pred_fallthru
      _
    // Predicated region
    $region18: #{critic_forward.1} parent=1 // pred_check
      _
    $region19: #{critic_forward.1} parent=1 // pred_check_branch
      %63 = sbr.rel (0) target = $region21
    $region20: #{critic_forward.1} parent=1 // pred_region
      %65 = vsyncadd [#allocation9], 0
      %s66 = sshll.u32 %s4, 4
      %s67 = int_to_ptr.hbm [resolvable:$true] %s66
      %s68 = sshll.u32 [#allocation10], 4
      %s69 = int_to_ptr.vmem [resolvable:$true] %s68
      %74 = dma.hbm_to_vmem [thread:$0]  %s67, 512, %s69, [#allocation9], 128, 128, 8
    $region21: #{critic_forward.1} parent=1 // pred_fallthru
      _
    // Predicated region
    $region22: #{critic_forward.1} parent=1 // pred_check
      _
    $region23: #{critic_forward.1} parent=1 // pred_check_branch
      %76 = sbr.rel (0) target = $region25
    $region24: #{critic_forward.1} parent=1 // pred_region
      _
    $region25: #{critic_forward.1} parent=1 // pred_fallthru
      _
    // Predicated region
    $region26: #{critic_forward.1} parent=1 // pred_check
      _
    $region27: #{critic_forward.1} parent=1 // pred_check_branch
      %78 = sbr.rel (0) target = $region29
    $region28: #{critic_forward.1} parent=1 // pred_region
      _
    $region29: #{critic_forward.1} parent=1 // pred_fallthru
      _
    // Predicated region
    $region30: #{critic_forward.1} parent=1 // pred_check
      _
    $region31: #{critic_forward.1} parent=1 // pred_check_branch
      %80 = sbr.rel (0) target = $region33
    $region32: #{critic_forward.1} parent=1 // pred_region
      %82 = dma.done [#allocation4], 128
    $region33: #{critic_forward.1} parent=1 // pred_fallthru
      _
    // Predicated region
    $region34: #{critic_forward.1} parent=1 // pred_check
      _
    $region35: #{critic_forward.1} parent=1 // pred_check_branch
      %84 = sbr.rel (0) target = $region37
    $region36: #{critic_forward.1} parent=1 // pred_region
      %86 = dma.done [#allocation6], 128
    $region37: #{critic_forward.1} parent=1 // pred_fallthru
      _
    // Predicated region
    $region38: #{critic_forward.1} parent=1 // pred_check
      _
    $region39: #{critic_forward.1} parent=1 // pred_check_branch
      %88 = sbr.rel (0) target = $region41
    $region40: #{critic_forward.1} parent=1 // pred_region
      %90 = dma.done [#allocation6], 256
    $region41: #{critic_forward.1} parent=1 // pred_fallthru
      _
    // Predicated region
    $region42: #{critic_forward.1} parent=1 // pred_check
      _
    $region43: #{critic_forward.1} parent=1 // pred_check_branch
      %92 = sbr.rel (0) target = $region45
    $region44: #{critic_forward.1} parent=1 // pred_region
      %94 = dma.done [#allocation9], 128
    $region45: #{critic_forward.1} parent=1 // pred_fallthru
      _
    // Predicated region
    $region46: #{critic_forward.1} parent=1 // pred_check
      _
    $region47: #{critic_forward.1} parent=1 // pred_check_branch
      %96 = sbr.rel (0) target = $region49
    $region48: #{critic_forward.1} parent=1 // pred_region
      %98 = dma.done [#allocation9], 512
    $region49: #{critic_forward.1} parent=1 // pred_fallthru
      _
    %v99 = vld [vmem:[#allocation3] sm:$0xff]
    %v100 = vld [vmem:[#allocation7] sm:$0xff]
    %v101 = vld [vmem:[#allocation7 + $0x8] sm:$0xff]
    %v102 = vld [vmem:[#allocation5] sm:$0xff]
    %v103 = vld [vmem:[#allocation8] sm:$0xff]
    %vm104 = vcmask 64512
    %v106 = vsel %vm104, %v102, 0
    %108 = vmatpush.msra.mxu0 0.0
    %109 = vmatpush.msra.mxu0 0.0
    %110 = vmatpush.msra.mxu0 0.0
    %111 = vmatpush.msra.mxu0 0.0
    %112 = vmatpush.msra.mxu0 0.0
    %113 = vmatpush.msra.mxu0 0.0
    %114 = vmatpush.msra.mxu0 0.0
    %115 = vmatpush.msra.mxu0 0.0
    %116 = vmatpush.msra.mxu0 0.0
    %117 = vmatpush.msra.mxu0 0.0
    %118 = vmatpush.msra.mxu0 0.0
    %119 = vmatpush.msra.mxu0 0.0
    %120 = vmatpush.msra.mxu0 0.0
    %121 = vmatpush.msra.mxu0 0.0
    %122 = vmatpush.msra.mxu0 0.0
    %123 = vmatpush.msra.mxu0 %v103
    %124 = vmatmul.f32.gmra.mxu0 %v106
    %v125 = vpop.f32.mrf.mxu0
    %v126 = vadd.f32 0.0, %v125
    %127 = vdwg.mxu0
    %vm128 = vcmask 130048
    %v130 = vsel %vm128, %v99, 0
    %132 = vmatpush.msra.mxu0 0.0
    %133 = vmatpush.msra.mxu0 0.0
    %134 = vmatpush.msra.mxu0 0.0
    %135 = vmatpush.msra.mxu0 0.0
    %136 = vmatpush.msra.mxu0 0.0
    %137 = vmatpush.msra.mxu0 0.0
    %138 = vmatpush.msra.mxu0 0.0
    %139 = vmatpush.msra.mxu0 0.0
    %140 = vmatpush.msra.mxu0 0.0
    %141 = vmatpush.msra.mxu0 0.0
    %142 = vmatpush.msra.mxu0 0.0
    %143 = vmatpush.msra.mxu0 0.0
    %144 = vmatpush.msra.mxu0 0.0
    %145 = vmatpush.msra.mxu0 0.0
    %146 = vmatpush.msra.mxu0 %v101
    %147 = vmatpush.msra.mxu0 %v100
    %148 = vmatmul.f32.gmra.mxu0 %v130
    %v149 = vpop.f32.mrf.mxu0
    %v150 = vadd.f32 %v126, %v149
    %151 = vdwg.mxu0
    %v152 = vld [vmem:[%s5] sm:$0x1]
    %v153 = vperm.slane %v152, 0
    %v154 = vadd.f32 %v150, %v153
    %v155 = vmax.f32 %v154, 0.0
    %v156 = vld [vmem:[#allocation10] sm:$0xff]
    %v157 = vld [vmem:[#allocation10 + $0x8] sm:$0xff]
    %v158 = vld [vmem:[#allocation10 + $0x10] sm:$0xff]
    %v159 = vld [vmem:[#allocation10 + $0x18] sm:$0xff]
    %v160 = vld [vmem:[%s5 + $0x1] sm:$0x1]
    %v161 = vperm.slane %v160, 0
    %vm162 = vcmask 261120
    %v164 = vsel %vm162, %v155, 0
    %166 = vmatpush.msra.mxu0 0.0
    %167 = vmatpush.msra.mxu0 0.0
    %168 = vmatpush.msra.mxu0 0.0
    %169 = vmatpush.msra.mxu0 0.0
    %170 = vmatpush.msra.mxu0 0.0
    %171 = vmatpush.msra.mxu0 0.0
    %172 = vmatpush.msra.mxu0 0.0
    %173 = vmatpush.msra.mxu0 0.0
    %174 = vmatpush.msra.mxu0 0.0
    %175 = vmatpush.msra.mxu0 0.0
    %176 = vmatpush.msra.mxu0 0.0
    %177 = vmatpush.msra.mxu0 0.0
    %178 = vmatpush.msra.mxu0 %v159
    %179 = vmatpush.msra.mxu0 %v158
    %180 = vmatpush.msra.mxu0 %v157
    %181 = vmatpush.msra.mxu0 %v156
    %182 = vmatmul.f32.gmra.mxu0 %v164
    %v183 = vpop.f32.mrf.mxu0
    %v184 = vadd.f32 %v161, %v183
    %185 = vdwg.mxu0
    %v186 = vmax.f32 %v184, 0.0
    %v187 = vld [vmem:[%s5 + $0x2] sm:$0x1]
    %v188 = vperm.slane %v187, 0
    %v189 = vmul.f32 %v186, %v188
    %v190 = vsel %vm162, %v189, 0.0
    %191 = vadd.xlane.f32.xlu0 %v190
    %v192 = vpop.xlane.xlu0 %191
    %s193 = sld [smem:[#allocation2]]
    %v194 = vstv %s193
    %v195 = vadd.f32 %v192, %v194
    %vm196 = vcmask 7168
    %197 = vst.msk [vmem:[%s7] sm:$0xff] %vm196, %v195
    // Predicated region
    $region50: #{critic_forward.1} parent=1 // pred_check
      _
    $region51: #{critic_forward.1} parent=1 // pred_check_branch
      %199 = sbr.rel (0) target = $region53
    $region52: #{critic_forward.1} parent=1 // pred_region
      _
    $region53: #{critic_forward.1} parent=1 // pred_fallthru
      _
    // Predicated region
    $region54: #{critic_forward.1} parent=1 // pred_check
      _
    $region55: #{critic_forward.1} parent=1 // pred_check_branch
      %201 = sbr.rel (0) target = $region57
    $region56: #{critic_forward.1} parent=1 // pred_region
      _
    $region57: #{critic_forward.1} parent=1 // pred_fallthru
      _
    %202 = vsyncpa [#allocation4], 1
    %203 = vsyncpa [#allocation6], 1
    %204 = vsyncpa [#allocation9], 1

</llo_original>
